<compile_context>
chip_gen: v5e
topology: v5e:2x2
jax: 0.10.0
libtpu: 0.0.40
codegen_flags: <defaults>
</compile_context>

<pallas_src>
import jax
import jax.numpy as jnp
from jax.experimental import pallas as pl
from jax.experimental.pallas import tpu as pltpu


def _ctx_embed_kernel(x_ref, w1_ref, b1_ref, w2_ref, b2_ref, o_ref):
    # Linear 1: bf16 operands on the MXU, f32 accumulation.
    x_bf = x_ref[...].astype(jnp.bfloat16)
    h = jnp.dot(x_bf, w1_ref[...], preferred_element_type=jnp.float32)
    h = h + b1_ref[...]                                   # (rows, hidden) + (1, hidden)
    # SiLU: exp on the EUP, approx reciprocal on the EUP, mul on the VPU.
    h = h * pl.reciprocal(1.0 + jnp.exp(-h), approx=True)

    # Linear 2: cast activations to bf16 for the MXU, accumulate in f32.
    y = jnp.dot(h.astype(jnp.bfloat16), w2_ref[...],
                preferred_element_type=jnp.float32)
    y = y + b2_ref[...]                                   # (rows, out_dim) + (1, out_dim)
    y = y * pl.reciprocal(1.0 + jnp.exp(-y), approx=True)

    o_ref[...] = y.astype(o_ref.dtype)


def prepare_params(w1, b1, w2, b2):
    """One-time host-side parameter prep (call ONCE, reuse every forward).

    Casts weights to bf16 (halves the dominant HBM->VMEM weight DMA and uses
    the MXU-native input dtype) and reshapes biases to (1, dim) f32 rows, so
    the per-call path carries no extra convert/reshape launches.
    Weights are expected in (in, out) layout (i.e. torch weight.T).
    """
    hidden = w1.shape[1]
    out_dim = w2.shape[1]
    return (
        w1.astype(jnp.bfloat16),
        b1.reshape(1, hidden).astype(jnp.float32),
        w2.astype(jnp.bfloat16),
        b2.reshape(1, out_dim).astype(jnp.float32),
    )


def context_embedder_pallas(x, params, *, in_channels, img_size, block_rows=512):
    """x: (B, latent_dim) f32 -> (B, in_channels, img_size, img_size) f32."""
    w1, b1, w2, b2 = params
    B, latent_dim = x.shape
    hidden = w1.shape[1]
    out_dim = w2.shape[1]
    assert out_dim == in_channels * img_size * img_size

    flops = 2 * B * (latent_dim * hidden + hidden * out_dim)
    transcendentals = 2 * B * (hidden + out_dim)          # exp + reciprocal each
    bytes_accessed = (
        x.size * x.dtype.itemsize                          # activations in
        + w1.size * 2 + w2.size * 2                        # bf16 weights
        + b1.size * 4 + b2.size * 4                        # f32 biases
        + B * out_dim * 4                                  # f32 output
    )
    cost = pl.CostEstimate(flops=flops, transcendentals=transcendentals,
                           bytes_accessed=bytes_accessed)

    if B <= block_rows:
        # Tiny-batch path: single whole-array VMEM invocation. No grid, no
        # pipelining, no host-side pad/astype/slice. Block == full array dims,
        # so the (8,128) rule is satisfied; the B-row store is a masked vst.
        vmem = pl.BlockSpec(memory_space=pltpu.MemorySpace.VMEM)
        y = pl.pallas_call(
            _ctx_embed_kernel,
            out_shape=jax.ShapeDtypeStruct((B, out_dim), jnp.float32),
            in_specs=[vmem, vmem, vmem, vmem, vmem],
            out_specs=vmem,
            cost_estimate=cost,
        )(x, w1, b1, w2, b2)
    else:
        # Batched path: amortize weight DMA over many contexts per call.
        # Weights/biases are resident blocks (index_map -> (0, 0)); the batch
        # axis is "parallel" so v7x megacore shards tiles across its 2 TCs.
        # block_rows=512 -> 2 MiB f32 output tile, safe for v7x's 64 MiB VMEM.
        y = pl.pallas_call(
            _ctx_embed_kernel,
            out_shape=jax.ShapeDtypeStruct((B, out_dim), jnp.float32),
            grid_spec=pltpu.PrefetchScalarGridSpec(
                num_scalar_prefetch=0,
                grid=(pl.cdiv(B, block_rows),),
                in_specs=[
                    pl.BlockSpec((block_rows, latent_dim), lambda i: (i, 0)),
                    pl.BlockSpec((latent_dim, hidden), lambda i: (0, 0)),
                    pl.BlockSpec((1, hidden), lambda i: (0, 0)),
                    pl.BlockSpec((hidden, out_dim), lambda i: (0, 0)),
                    pl.BlockSpec((1, out_dim), lambda i: (0, 0)),
                ],
                out_specs=pl.BlockSpec((block_rows, out_dim), lambda i: (i, 0)),
            ),
            compiler_params=pltpu.CompilerParams(
                dimension_semantics=("parallel",)),
            cost_estimate=cost,
        )(x, w1, b1, w2, b2)

    # Row-major reshape == torch .view(-1, C, H, W) (NCHW).
    return y.reshape(B, in_channels, img_size, img_size)


def init_params(key, latent_dim, hidden, out_dim):
    """Deterministic init mimicking torch.nn.Linear defaults (U(-1/sqrt(fan_in), +))."""
    k1, k2, k3, k4 = jax.random.split(key, 4)
    bound1 = 1.0 / (latent_dim ** 0.5)
    bound2 = 1.0 / (hidden ** 0.5)
    # Stored as (in, out) so the kernel does x @ W (equivalent to torch x @ W.T).
    w1 = jax.random.uniform(k1, (latent_dim, hidden), jnp.float32, -bound1, bound1)
    b1 = jax.random.uniform(k2, (hidden,), jnp.float32, -bound1, bound1)
    w2 = jax.random.uniform(k3, (hidden, out_dim), jnp.float32, -bound2, bound2)
    b2 = jax.random.uniform(k4, (out_dim,), jnp.float32, -bound2, bound2)
    return w1, b1, w2, b2


if __name__ == "__main__":
    # Small, module-consistent shapes.
    B = 2
    in_channels = 4
    img_size = 16
    latent_dim = 256
    rank_factor = 2
    hidden = latent_dim // rank_factor              # 128
    out_dim = in_channels * img_size * img_size     # 1024

    key = jax.random.PRNGKey(0)
    kx, kp = jax.random.split(key)
    x = jax.random.normal(kx, (B, latent_dim), jnp.float32)
    w1, b1, w2, b2 = init_params(kp, latent_dim, hidden, out_dim)

    # One-time parameter prep (hoisted OUT of the per-call path).
    params = prepare_params(w1, b1, w2, b2)

    out = context_embedder_pallas(
        x, params, in_channels=in_channels, img_size=img_size)
    out = jax.block_until_ready(out)
    assert out.shape == (B, in_channels, img_size, img_size)

    def silu(v):
        return v * jax.nn.sigmoid(v)

    # Reference along the same bf16-operand / f32-accumulate path.
    xb = x.astype(jnp.bfloat16)
    h_ref = silu(jnp.dot(xb, params[0], preferred_element_type=jnp.float32) + b1)
    y_ref = silu(jnp.dot(h_ref.astype(jnp.bfloat16), params[2],
                         preferred_element_type=jnp.float32) + b2)
    ref_bf16 = y_ref.reshape(B, in_channels, img_size, img_size)
    assert jnp.allclose(out, ref_bf16, atol=2e-2, rtol=2e-2)

    # Looser sanity check against the pure-f32 module semantics.
    ref_f32 = silu(silu(x @ w1 + b1) @ w2 + b2).reshape(
        B, in_channels, img_size, img_size)
    assert jnp.allclose(out, ref_f32, atol=5e-2, rtol=5e-2)

    # Also exercise the amortized batched (grid) path once.
    Bb = 1024
    x_big = jax.random.normal(jax.random.PRNGKey(1), (Bb, latent_dim), jnp.float32)
    out_big = context_embedder_pallas(
        x_big, params, in_channels=in_channels, img_size=img_size)
    out_big = jax.block_until_ready(out_big)
    assert out_big.shape == (Bb, in_channels, img_size, img_size)
    h_big = silu(jnp.dot(x_big.astype(jnp.bfloat16), params[0],
                         preferred_element_type=jnp.float32) + b1)
    y_big = silu(jnp.dot(h_big.astype(jnp.bfloat16), params[2],
                         preferred_element_type=jnp.float32) + b2)
    assert jnp.allclose(out_big.reshape(Bb, out_dim), y_big, atol=2e-2, rtol=2e-2)

    print("KERNEL_OK")
</pallas_src>

<mosaic_0001>
module attributes {stable_mosaic.version = 11 : i64} {
  func.func @_ctx_embed_kernel(%arg0: memref<2x256xf32, #tpu.memory_space<vmem>>, %arg1: memref<256x128xbf16, #tpu.memory_space<vmem>>, %arg2: memref<1x128xf32, #tpu.memory_space<vmem>>, %arg3: memref<128x1024xbf16, #tpu.memory_space<vmem>>, %arg4: memref<1x1024xf32, #tpu.memory_space<vmem>>, %arg5: memref<2x1024xf32, #tpu.memory_space<vmem>>) attributes {dimension_semantics = [], scalar_prefetch = 0 : i64, scratch_operands = 0 : i64, tpu.core_type = #tpu.core_type<tc>} {
    %c0 = arith.constant 0 : index
    %c0_0 = arith.constant 0 : index
    %0 = vector.load %arg0[%c0, %c0_0] : memref<2x256xf32, #tpu.memory_space<vmem>>, vector<2x256xf32>
    %1 = arith.truncf %0 : vector<2x256xf32> to vector<2x256xbf16>
    %c0_1 = arith.constant 0 : index
    %c0_2 = arith.constant 0 : index
    %2 = vector.load %arg1[%c0_1, %c0_2] : memref<256x128xbf16, #tpu.memory_space<vmem>>, vector<256x128xbf16>
    %cst = arith.constant dense<0.000000e+00> : vector<2x128xf32>
    %3 = tpu.matmul %1, %2, %cst {dimension_numbers = #tpu.dot_dimension_numbers<[1], [0], [0], [1], [0, 0, 1, 1], [], []>} : vector<2x256xbf16>, vector<256x128xbf16>, vector<2x128xf32> -> vector<2x128xf32>
    %c0_3 = arith.constant 0 : index
    %c0_4 = arith.constant 0 : index
    %4 = vector.load %arg2[%c0_3, %c0_4] : memref<1x128xf32, #tpu.memory_space<vmem>>, vector<1x128xf32>
    %5 = vector.broadcast %4 : vector<1x128xf32> to vector<2x128xf32>
    %6 = arith.addf %3, %5 : vector<2x128xf32>
    %cst_5 = arith.constant 0.000000e+00 : f32
    %7 = vector.broadcast %cst_5 : f32 to vector<2x128xf32>
    %8 = arith.subf %7, %6 : vector<2x128xf32>
    %9 = math.exp %8 : vector<2x128xf32>
    %cst_6 = arith.constant 1.000000e+00 : f32
    %10 = vector.broadcast %cst_6 : f32 to vector<2x128xf32>
    %11 = arith.addf %10, %9 : vector<2x128xf32>
    %12 = tpu.reciprocal %11 {approx = true} : vector<2x128xf32> -> vector<2x128xf32>
    %13 = arith.mulf %6, %12 : vector<2x128xf32>
    %14 = arith.truncf %13 : vector<2x128xf32> to vector<2x128xbf16>
    %c0_7 = arith.constant 0 : index
    %c0_8 = arith.constant 0 : index
    %15 = vector.load %arg3[%c0_7, %c0_8] : memref<128x1024xbf16, #tpu.memory_space<vmem>>, vector<128x1024xbf16>
    %cst_9 = arith.constant dense<0.000000e+00> : vector<2x1024xf32>
    %16 = tpu.matmul %14, %15, %cst_9 {dimension_numbers = #tpu.dot_dimension_numbers<[1], [0], [0], [1], [0, 0, 1, 1], [], []>} : vector<2x128xbf16>, vector<128x1024xbf16>, vector<2x1024xf32> -> vector<2x1024xf32>
    %c0_10 = arith.constant 0 : index
    %c0_11 = arith.constant 0 : index
    %17 = vector.load %arg4[%c0_10, %c0_11] : memref<1x1024xf32, #tpu.memory_space<vmem>>, vector<1x1024xf32>
    %18 = vector.broadcast %17 : vector<1x1024xf32> to vector<2x1024xf32>
    %19 = arith.addf %16, %18 : vector<2x1024xf32>
    %cst_12 = arith.constant 0.000000e+00 : f32
    %20 = vector.broadcast %cst_12 : f32 to vector<2x1024xf32>
    %21 = arith.subf %20, %19 : vector<2x1024xf32>
    %22 = math.exp %21 : vector<2x1024xf32>
    %cst_13 = arith.constant 1.000000e+00 : f32
    %23 = vector.broadcast %cst_13 : f32 to vector<2x1024xf32>
    %24 = arith.addf %23, %22 : vector<2x1024xf32>
    %25 = tpu.reciprocal %24 {approx = true} : vector<2x1024xf32> -> vector<2x1024xf32>
    %26 = arith.mulf %19, %25 : vector<2x1024xf32>
    %c0_14 = arith.constant 0 : index
    %c0_15 = arith.constant 0 : index
    %27 = vector.load %arg5[%c0_14, %c0_15] : memref<2x1024xf32, #tpu.memory_space<vmem>>, vector<2x1024xf32>
    tpu.vector_store %arg5[%c0_14, %c0_15], %26 {strides = array<i32>} : memref<2x1024xf32, #tpu.memory_space<vmem>>, vector<2x1024xf32>,
    return
  }
}

</mosaic_0001>

<llo_original>
// kernel: tpu_custom_call.1
$region0: #{tpu_custom_call.1}
  #allocation0 [shape = 'u32[]', space=smem, size = 0x4, offset = 0x4, fixed_abs, tag = 'smem constant byte address 0x4 - core index']
  #allocation1 [shape = 'u32[72,128]{1,0:T(1,128)}', space=vmem, size = 0x9000, scoped, tag = 'internal scratch']
  %s0 = inlined_call_operand.hbm [shape: f32[2,256], index: 0, kind: input, shape index: {}]
  %s1 = inlined_call_operand.hbm [shape: bf16[256,128], index: 1, kind: input, shape index: {}]
  %s2 = inlined_call_operand.vmem [shape: f32[1,128], index: 2, kind: input, shape index: {}]
  %s3 = inlined_call_operand.hbm [shape: bf16[128,1024], index: 3, kind: input, shape index: {}]
  %s4 = inlined_call_operand.hbm [shape: f32[1,1024], index: 4, kind: input, shape index: {}]
  %s5 = inlined_call_operand.hbm [shape: f32[2,1024], index: 5, kind: output, shape index: {}]
  %s6 = sld [smem:[#allocation0]]
  $region46: #{tpu_custom_call.1} parent=0
    _
  %s8 = ssub.s32 1, %s6
  %s9 = scalar_select 0, %s8, %s6
  $region1: #{tpu_custom_call.1} parent=0
    #allocation2 [shape = 'u8[2048]{0}', space=vmem, size = 0x800, scoped, tag = 'input window, operand 0, single buffered']
    #allocation3 [shape = 's32[1]{0}', space=sflag, size = 0x4, scoped, tag = 'scoped memory for tpu_custom_call.1']
    #allocation4 [shape = 's32[1]{0}', space=sflag, size = 0x4, scoped, tag = 'scoped memory for tpu_custom_call.1']
    #allocation5 [shape = 'u8[65536]{0}', space=vmem, size = 0x10000, scoped, tag = 'input window, operand 1, single buffered']
    #allocation6 [shape = 's32[1]{0}', space=sflag, size = 0x4, scoped, tag = 'scoped memory for tpu_custom_call.1']
    #allocation7 [shape = 'u8[262144]{0}', space=vmem, size = 0x40000, scoped, tag = 'input window, operand 3, single buffered']
    #allocation8 [shape = 'u8[4096]{0}', space=vmem, size = 0x1000, scoped, tag = 'input window, operand 4, single buffered']
    #allocation9 [shape = 's32[1]{0}', space=sflag, size = 0x4, scoped, tag = 'scoped memory for tpu_custom_call.1']
    #allocation10 [shape = 'u8[8192]{0}', space=vmem, size = 0x2000, scoped, tag = 'output window, operand 0, single buffered']
    %10 = vsyncpa [#allocation3], 0
    %11 = vsyncpa [#allocation6], 0
    %12 = vsyncpa [#allocation9], 0
    %13 = vsyncpa [#allocation4], 0
    // Predicated region
    $region2: #{tpu_custom_call.1} parent=1 // pred_check
      _
    $region3: #{tpu_custom_call.1} parent=1 // pred_check_branch
      %15 = sbr.rel (0) target = $region5
    $region4: #{tpu_custom_call.1} parent=1 // pred_region
      %17 = vsyncadd [#allocation3], 0
      %s19 = sshll.u32 %s0, 4
      %s20 = int_to_ptr.hbm [resolvable:$true] %s19
      %s21 = sshll.u32 [#allocation2], 4
      %s22 = int_to_ptr.vmem [resolvable:$true] %s21
      %24 = dma.hbm_to_vmem [thread:$0]  %s20, 64, %s22, [#allocation3]
    $region5: #{tpu_custom_call.1} parent=1 // pred_fallthru
      _
    // Predicated region
    $region6: #{tpu_custom_call.1} parent=1 // pred_check
      _
    $region7: #{tpu_custom_call.1} parent=1 // pred_check_branch
      %26 = sbr.rel (0) target = $region9
    $region8: #{tpu_custom_call.1} parent=1 // pred_region
      %28 = vsyncadd [#allocation6], 0
      %s29 = sshll.u32 %s1, 4
      %s30 = int_to_ptr.hbm [resolvable:$true] %s29
      %s31 = sshll.u32 [#allocation5], 4
      %s32 = int_to_ptr.vmem [resolvable:$true] %s31
      %37 = dma.hbm_to_vmem [thread:$0]  %s30, 2048, %s32, [#allocation6], 64, 64, 4
    $region9: #{tpu_custom_call.1} parent=1 // pred_fallthru
      _
    // Predicated region
    $region10: #{tpu_custom_call.1} parent=1 // pred_check
      _
    $region11: #{tpu_custom_call.1} parent=1 // pred_check_branch
      %39 = sbr.rel (0) target = $region13
    $region12: #{tpu_custom_call.1} parent=1 // pred_region
      _
    $region13: #{tpu_custom_call.1} parent=1 // pred_fallthru
      _
    // Predicated region
    $region14: #{tpu_custom_call.1} parent=1 // pred_check
      _
    $region15: #{tpu_custom_call.1} parent=1 // pred_check_branch
      %41 = sbr.rel (0) target = $region17
    $region16: #{tpu_custom_call.1} parent=1 // pred_region
      %43 = vsyncadd [#allocation6], 0
      %s44 = sshll.u32 %s3, 4
      %s45 = int_to_ptr.hbm [resolvable:$true] %s44
      %s46 = sshll.u32 [#allocation7], 4
      %s47 = int_to_ptr.vmem [resolvable:$true] %s46
      %52 = dma.hbm_to_vmem [thread:$0]  %s45, 8192, %s47, [#allocation6], 512, 512, 32
    $region17: #{tpu_custom_call.1} parent=1 // pred_fallthru
      _
    // Predicated region
    $region18: #{tpu_custom_call.1} parent=1 // pred_check
      _
    $region19: #{tpu_custom_call.1} parent=1 // pred_check_branch
      %54 = sbr.rel (0) target = $region21
    $region20: #{tpu_custom_call.1} parent=1 // pred_region
      %56 = vsyncadd [#allocation9], 0
      %s58 = sshll.u32 %s4, 4
      %s59 = int_to_ptr.hbm [resolvable:$true] %s58
      %s60 = sshll.u32 [#allocation8], 4
      %s61 = int_to_ptr.vmem [resolvable:$true] %s60
      %63 = dma.hbm_to_vmem [thread:$0]  %s59, 128, %s61, [#allocation9]
    $region21: #{tpu_custom_call.1} parent=1 // pred_fallthru
      _
    // Predicated region
    $region22: #{tpu_custom_call.1} parent=1 // pred_check
      _
    $region23: #{tpu_custom_call.1} parent=1 // pred_check_branch
      %65 = sbr.rel (0) target = $region25
    $region24: #{tpu_custom_call.1} parent=1 // pred_region
      %67 = dma.done [#allocation3], 64
    $region25: #{tpu_custom_call.1} parent=1 // pred_fallthru
      _
    // Predicated region
    $region26: #{tpu_custom_call.1} parent=1 // pred_check
      _
    $region27: #{tpu_custom_call.1} parent=1 // pred_check_branch
      %69 = sbr.rel (0) target = $region29
    $region28: #{tpu_custom_call.1} parent=1 // pred_region
      %71 = dma.done [#allocation6], 2048
    $region29: #{tpu_custom_call.1} parent=1 // pred_fallthru
      _
    // Predicated region
    $region30: #{tpu_custom_call.1} parent=1 // pred_check
      _
    $region31: #{tpu_custom_call.1} parent=1 // pred_check_branch
      %73 = sbr.rel (0) target = $region33
    $region32: #{tpu_custom_call.1} parent=1 // pred_region
      %75 = dma.done [#allocation6], 8192
    $region33: #{tpu_custom_call.1} parent=1 // pred_fallthru
      _
    // Predicated region
    $region34: #{tpu_custom_call.1} parent=1 // pred_check
      _
    $region35: #{tpu_custom_call.1} parent=1 // pred_check_branch
      %77 = sbr.rel (0) target = $region37
    $region36: #{tpu_custom_call.1} parent=1 // pred_region
      %79 = dma.done [#allocation9], 128
    $region37: #{tpu_custom_call.1} parent=1 // pred_fallthru
      _
    %v80 = vld [vmem:[#allocation2] sm:$0xf]
    %82 = vst [vmem:[#allocation1] ss:$4 sm:$0xff] %v80
    %v83 = vld.sshfl [vmem:[#allocation1] sm:$0xff pattern:$0x73625140]
    %v84 = vld.sshfl [vmem:[#allocation1 + $0x8] sm:$0xff pattern:$0x73625140]
    %v87 = vpack.c.bf16 %v83, %v83
    %v88 = vpack.c.bf16 %v84, %v84
    %v89 = vld [vmem:[#allocation5] sm:$0xf]
    %v90 = vld [vmem:[#allocation5 + $0x4] sm:$0xf]
    %v91 = vld [vmem:[#allocation5 + $0x8] sm:$0xf]
    %v92 = vld [vmem:[#allocation5 + $0xc] sm:$0xf]
    %v93 = vld [vmem:[#allocation5 + $0x10] sm:$0xf]
    %v94 = vld [vmem:[#allocation5 + $0x14] sm:$0xf]
    %v95 = vld [vmem:[#allocation5 + $0x18] sm:$0xf]
    %v96 = vld [vmem:[#allocation5 + $0x1c] sm:$0xf]
    %v97 = vld [vmem:[#allocation5 + $0x20] sm:$0xf]
    %v98 = vld [vmem:[#allocation5 + $0x24] sm:$0xf]
    %v99 = vld [vmem:[#allocation5 + $0x28] sm:$0xf]
    %v100 = vld [vmem:[#allocation5 + $0x2c] sm:$0xf]
    %v101 = vld [vmem:[#allocation5 + $0x30] sm:$0xf]
    %v102 = vld [vmem:[#allocation5 + $0x34] sm:$0xf]
    %v103 = vld [vmem:[#allocation5 + $0x38] sm:$0xf]
    %v104 = vld [vmem:[#allocation5 + $0x3c] sm:$0xf]
    %v105 = vld [vmem:[#allocation5 + $0x40] sm:$0xf]
    %v106 = vld [vmem:[#allocation5 + $0x44] sm:$0xf]
    %v107 = vld [vmem:[#allocation5 + $0x48] sm:$0xf]
    %v108 = vld [vmem:[#allocation5 + $0x4c] sm:$0xf]
    %v109 = vld [vmem:[#allocation5 + $0x50] sm:$0xf]
    %v110 = vld [vmem:[#allocation5 + $0x54] sm:$0xf]
    %v111 = vld [vmem:[#allocation5 + $0x58] sm:$0xf]
    %v112 = vld [vmem:[#allocation5 + $0x5c] sm:$0xf]
    %v113 = vld [vmem:[#allocation5 + $0x60] sm:$0xf]
    %v114 = vld [vmem:[#allocation5 + $0x64] sm:$0xf]
    %v115 = vld [vmem:[#allocation5 + $0x68] sm:$0xf]
    %v116 = vld [vmem:[#allocation5 + $0x6c] sm:$0xf]
    %v117 = vld [vmem:[#allocation5 + $0x70] sm:$0xf]
    %v118 = vld [vmem:[#allocation5 + $0x74] sm:$0xf]
    %v119 = vld [vmem:[#allocation5 + $0x78] sm:$0xf]
    %v120 = vld [vmem:[#allocation5 + $0x7c] sm:$0xf]
    %v121 = vld [vmem:[%s2] sm:$0x1]
    %v123 = vperm.slane %v121, 0
    %v157 = vunpack.c.l.b16 %v89
    %v158 = vunpack.c.l.b16 %v90
    %v159 = vunpack.c.l.b16 %v91
    %v160 = vunpack.c.l.b16 %v92
    %v161 = vunpack.c.l.b16 %v93
    %v162 = vunpack.c.l.b16 %v94
    %v163 = vunpack.c.l.b16 %v95
    %v164 = vunpack.c.l.b16 %v96
    %v165 = vunpack.c.l.b16 %v97
    %v166 = vunpack.c.l.b16 %v98
    %v167 = vunpack.c.l.b16 %v99
    %v168 = vunpack.c.l.b16 %v100
    %v169 = vunpack.c.l.b16 %v101
    %v170 = vunpack.c.l.b16 %v102
    %v171 = vunpack.c.l.b16 %v103
    %v172 = vunpack.c.l.b16 %v104
    %v173 = vunpack.c.l.b16 %v105
    %v174 = vunpack.c.l.b16 %v106
    %v175 = vunpack.c.l.b16 %v107
    %v176 = vunpack.c.l.b16 %v108
    %v177 = vunpack.c.l.b16 %v109
    %v178 = vunpack.c.l.b16 %v110
    %v179 = vunpack.c.l.b16 %v111
    %v180 = vunpack.c.l.b16 %v112
    %v181 = vunpack.c.l.b16 %v113
    %v182 = vunpack.c.l.b16 %v114
    %v183 = vunpack.c.l.b16 %v115
    %v184 = vunpack.c.l.b16 %v116
    %v185 = vunpack.c.l.b16 %v117
    %v186 = vunpack.c.l.b16 %v118
    %v187 = vunpack.c.l.b16 %v119
    %v188 = vunpack.c.l.b16 %v120
    %v189 = vpack.c.b16 %v158, %v157
    %v190 = vpack.c.b16 %v160, %v159
    %v191 = vpack.c.b16 %v162, %v161
    %v192 = vpack.c.b16 %v164, %v163
    %v193 = vpack.c.b16 %v166, %v165
    %v194 = vpack.c.b16 %v168, %v167
    %v195 = vpack.c.b16 %v170, %v169
    %v196 = vpack.c.b16 %v172, %v171
    %v197 = vpack.c.b16 %v174, %v173
    %v198 = vpack.c.b16 %v176, %v175
    %v199 = vpack.c.b16 %v178, %v177
    %v200 = vpack.c.b16 %v180, %v179
    %v201 = vpack.c.b16 %v182, %v181
    %v202 = vpack.c.b16 %v184, %v183
    %v203 = vpack.c.b16 %v186, %v185
    %v204 = vpack.c.b16 %v188, %v187
    %221 = vmatpush.bf16.msra.mxu0 %v196
    %222 = vmatpush.bf16.msra.mxu0 %v195
    %223 = vmatpush.bf16.msra.mxu0 %v194
    %224 = vmatpush.bf16.msra.mxu0 %v193
    %225 = vmatpush.bf16.msra.mxu0 %v192
    %226 = vmatpush.bf16.msra.mxu0 %v191
    %227 = vmatpush.bf16.msra.mxu0 %v190
    %228 = vmatpush.bf16.msra.mxu0 %v189
    %229 = vmatmul.bf16.gmra.mxu0 %v87
    %v230 = vpop.f32.mrf.mxu0
    %v231 = vadd.f32 %v123, %v230
    %v232 = vpop.f32.mrf.mxu0
    %233 = vdwg.mxu0
    %234 = vmatpush.bf16.msra.mxu0 %v204
    %235 = vmatpush.bf16.msra.mxu0 %v203
    %236 = vmatpush.bf16.msra.mxu0 %v202
    %237 = vmatpush.bf16.msra.mxu0 %v201
    %238 = vmatpush.bf16.msra.mxu0 %v200
    %239 = vmatpush.bf16.msra.mxu0 %v199
    %240 = vmatpush.bf16.msra.mxu0 %v198
    %241 = vmatpush.bf16.msra.mxu0 %v197
    %242 = vmatmul.bf16.gmra.mxu0 %v88
    %v243 = vpop.f32.mrf.mxu0
    %v244 = vadd.f32 %v231, %v243
    %v245 = vpop.f32.mrf.mxu0
    %246 = vdwg.mxu0
    %v247 = vsub.f32 0.0, %v244
    %v248 = vmul.f32 %v247, 1.442695
    %v249 = vpow.pop %v248
    %v250 = vadd.f32 %v249, 1.0
    %v251 = vrcp.pop %v250
    %v252 = vmul.f32 %v244, %v251
    %v253 = vpack.c.bf16 %v252, %v252
    %v254 = vld [vmem:[#allocation7] sm:$0xff]
    %v255 = vld [vmem:[#allocation7 + $0x8] sm:$0xff]
    %v256 = vld [vmem:[#allocation7 + $0x10] sm:$0xff]
    %v257 = vld [vmem:[#allocation7 + $0x18] sm:$0xff]
    %v258 = vld [vmem:[#allocation7 + $0x20] sm:$0xff]
    %v259 = vld [vmem:[#allocation7 + $0x28] sm:$0xff]
    %v260 = vld [vmem:[#allocation7 + $0x30] sm:$0xff]
    %v261 = vld [vmem:[#allocation7 + $0x38] sm:$0xff]
    %v262 = vld [vmem:[#allocation7 + $0x40] sm:$0xff]
    %v263 = vld [vmem:[#allocation7 + $0x48] sm:$0xff]
    %v264 = vld [vmem:[#allocation7 + $0x50] sm:$0xff]
    %v265 = vld [vmem:[#allocation7 + $0x58] sm:$0xff]
    %v266 = vld [vmem:[#allocation7 + $0x60] sm:$0xff]
    %v267 = vld [vmem:[#allocation7 + $0x68] sm:$0xff]
    %v268 = vld [vmem:[#allocation7 + $0x70] sm:$0xff]
    %v269 = vld [vmem:[#allocation7 + $0x78] sm:$0xff]
    %v270 = vld [vmem:[#allocation7 + $0x80] sm:$0xff]
    %v271 = vld [vmem:[#allocation7 + $0x88] sm:$0xff]
    %v272 = vld [vmem:[#allocation7 + $0x90] sm:$0xff]
    %v273 = vld [vmem:[#allocation7 + $0x98] sm:$0xff]
    %v274 = vld [vmem:[#allocation7 + $0xa0] sm:$0xff]
    %v275 = vld [vmem:[#allocation7 + $0xa8] sm:$0xff]
    %v276 = vld [vmem:[#allocation7 + $0xb0] sm:$0xff]
    %v277 = vld [vmem:[#allocation7 + $0xb8] sm:$0xff]
    %v278 = vld [vmem:[#allocation7 + $0xc0] sm:$0xff]
    %v279 = vld [vmem:[#allocation7 + $0xc8] sm:$0xff]
    %v280 = vld [vmem:[#allocation7 + $0xd0] sm:$0xff]
    %v281 = vld [vmem:[#allocation7 + $0xd8] sm:$0xff]
    %v282 = vld [vmem:[#allocation7 + $0xe0] sm:$0xff]
    %v283 = vld [vmem:[#allocation7 + $0xe8] sm:$0xff]
    %v284 = vld [vmem:[#allocation7 + $0xf0] sm:$0xff]
    %v285 = vld [vmem:[#allocation7 + $0xf8] sm:$0xff]
    %v286 = vld [vmem:[#allocation7 + $0x100] sm:$0xff]
    %v287 = vld [vmem:[#allocation7 + $0x108] sm:$0xff]
    %v288 = vld [vmem:[#allocation7 + $0x110] sm:$0xff]
    %v289 = vld [vmem:[#allocation7 + $0x118] sm:$0xff]
    %v290 = vld [vmem:[#allocation7 + $0x120] sm:$0xff]
    %v291 = vld [vmem:[#allocation7 + $0x128] sm:$0xff]
    %v292 = vld [vmem:[#allocation7 + $0x130] sm:$0xff]
    %v293 = vld [vmem:[#allocation7 + $0x138] sm:$0xff]
    %v294 = vld [vmem:[#allocation7 + $0x140] sm:$0xff]
    %v295 = vld [vmem:[#allocation7 + $0x148] sm:$0xff]
    %v296 = vld [vmem:[#allocation7 + $0x150] sm:$0xff]
    %v297 = vld [vmem:[#allocation7 + $0x158] sm:$0xff]
    %v298 = vld [vmem:[#allocation7 + $0x160] sm:$0xff]
    %v299 = vld [vmem:[#allocation7 + $0x168] sm:$0xff]
    %v300 = vld [vmem:[#allocation7 + $0x170] sm:$0xff]
    %v301 = vld [vmem:[#allocation7 + $0x178] sm:$0xff]
    %v302 = vld [vmem:[#allocation7 + $0x180] sm:$0xff]
    %v303 = vld [vmem:[#allocation7 + $0x188] sm:$0xff]
    %v304 = vld [vmem:[#allocation7 + $0x190] sm:$0xff]
    %v305 = vld [vmem:[#allocation7 + $0x198] sm:$0xff]
    %v306 = vld [vmem:[#allocation7 + $0x1a0] sm:$0xff]
    %v307 = vld [vmem:[#allocation7 + $0x1a8] sm:$0xff]
    %v308 = vld [vmem:[#allocation7 + $0x1b0] sm:$0xff]
    %v309 = vld [vmem:[#allocation7 + $0x1b8] sm:$0xff]
    %v310 = vld [vmem:[#allocation7 + $0x1c0] sm:$0xff]
    %v311 = vld [vmem:[#allocation7 + $0x1c8] sm:$0xff]
    %v312 = vld [vmem:[#allocation7 + $0x1d0] sm:$0xff]
    %v313 = vld [vmem:[#allocation7 + $0x1d8] sm:$0xff]
    %v314 = vld [vmem:[#allocation7 + $0x1e0] sm:$0xff]
    %v315 = vld [vmem:[#allocation7 + $0x1e8] sm:$0xff]
    %v316 = vld [vmem:[#allocation7 + $0x1f0] sm:$0xff]
    %v317 = vld [vmem:[#allocation7 + $0x1f8] sm:$0xff]
    %v318 = vld [vmem:[#allocation8] sm:$0xff]
    %v320 = vperm.slane %v318, 0
    %v321 = vperm.slane %v318, 1
    %v322 = vperm.slane %v318, 2
    %v323 = vperm.slane %v318, 3
    %v324 = vperm.slane %v318, 4
    %v325 = vperm.slane %v318, 5
    %v326 = vperm.slane %v318, 6
    %v327 = vperm.slane %v318, 7
    %v400 = vunpack.c.l.b16 %v254
    %v401 = vunpack.c.h.b16 %v254
    %v402 = vunpack.c.l.b16 %v255
    %v403 = vunpack.c.h.b16 %v255
    %v404 = vunpack.c.l.b16 %v256
    %v405 = vunpack.c.h.b16 %v256
    %v406 = vunpack.c.l.b16 %v257
    %v407 = vunpack.c.h.b16 %v257
    %v408 = vunpack.c.l.b16 %v258
    %v409 = vunpack.c.h.b16 %v258
    %v410 = vunpack.c.l.b16 %v259
    %v411 = vunpack.c.h.b16 %v259
    %v412 = vunpack.c.l.b16 %v260
    %v413 = vunpack.c.h.b16 %v260
    %v414 = vunpack.c.l.b16 %v261
    %v415 = vunpack.c.h.b16 %v261
    %v416 = vunpack.c.l.b16 %v262
    %v417 = vunpack.c.h.b16 %v262
    %v418 = vunpack.c.l.b16 %v263
    %v419 = vunpack.c.h.b16 %v263
    %v420 = vunpack.c.l.b16 %v264
    %v421 = vunpack.c.h.b16 %v264
    %v422 = vunpack.c.l.b16 %v265
    %v423 = vunpack.c.h.b16 %v265
    %v424 = vunpack.c.l.b16 %v266
    %v425 = vunpack.c.h.b16 %v266
    %v426 = vunpack.c.l.b16 %v267
    %v427 = vunpack.c.h.b16 %v267
    %v428 = vunpack.c.l.b16 %v268
    %v429 = vunpack.c.h.b16 %v268
    %v430 = vunpack.c.l.b16 %v269
    %v431 = vunpack.c.h.b16 %v269
    %v432 = vunpack.c.l.b16 %v270
    %v433 = vunpack.c.h.b16 %v270
    %v434 = vunpack.c.l.b16 %v271
    %v435 = vunpack.c.h.b16 %v271
    %v436 = vunpack.c.l.b16 %v272
    %v437 = vunpack.c.h.b16 %v272
    %v438 = vunpack.c.l.b16 %v273
    %v439 = vunpack.c.h.b16 %v273
    %v440 = vunpack.c.l.b16 %v274
    %v441 = vunpack.c.h.b16 %v274
    %v442 = vunpack.c.l.b16 %v275
    %v443 = vunpack.c.h.b16 %v275
    %v444 = vunpack.c.l.b16 %v276
    %v445 = vunpack.c.h.b16 %v276
    %v446 = vunpack.c.l.b16 %v277
    %v447 = vunpack.c.h.b16 %v277
    %v448 = vunpack.c.l.b16 %v278
    %v449 = vunpack.c.h.b16 %v278
    %v450 = vunpack.c.l.b16 %v279
    %v451 = vunpack.c.h.b16 %v279
    %v452 = vunpack.c.l.b16 %v280
    %v453 = vunpack.c.h.b16 %v280
    %v454 = vunpack.c.l.b16 %v281
    %v455 = vunpack.c.h.b16 %v281
    %v456 = vunpack.c.l.b16 %v282
    %v457 = vunpack.c.h.b16 %v282
    %v458 = vunpack.c.l.b16 %v283
    %v459 = vunpack.c.h.b16 %v283
    %v460 = vunpack.c.l.b16 %v284
    %v461 = vunpack.c.h.b16 %v284
    %v462 = vunpack.c.l.b16 %v285
    %v463 = vunpack.c.h.b16 %v285
    %v464 = vunpack.c.l.b16 %v286
    %v465 = vunpack.c.h.b16 %v286
    %v466 = vunpack.c.l.b16 %v287
    %v467 = vunpack.c.h.b16 %v287
    %v468 = vunpack.c.l.b16 %v288
    %v469 = vunpack.c.h.b16 %v288
    %v470 = vunpack.c.l.b16 %v289
    %v471 = vunpack.c.h.b16 %v289
    %v472 = vunpack.c.l.b16 %v290
    %v473 = vunpack.c.h.b16 %v290
    %v474 = vunpack.c.l.b16 %v291
    %v475 = vunpack.c.h.b16 %v291
    %v476 = vunpack.c.l.b16 %v292
    %v477 = vunpack.c.h.b16 %v292
    %v478 = vunpack.c.l.b16 %v293
    %v479 = vunpack.c.h.b16 %v293
    %v480 = vunpack.c.l.b16 %v294
    %v481 = vunpack.c.h.b16 %v294
    %v482 = vunpack.c.l.b16 %v295
    %v483 = vunpack.c.h.b16 %v295
    %v484 = vunpack.c.l.b16 %v296
    %v485 = vunpack.c.h.b16 %v296
    %v486 = vunpack.c.l.b16 %v297
    %v487 = vunpack.c.h.b16 %v297
    %v488 = vunpack.c.l.b16 %v298
    %v489 = vunpack.c.h.b16 %v298
    %v490 = vunpack.c.l.b16 %v299
    %v491 = vunpack.c.h.b16 %v299
    %v492 = vunpack.c.l.b16 %v300
    %v493 = vunpack.c.h.b16 %v300
    %v494 = vunpack.c.l.b16 %v301
    %v495 = vunpack.c.h.b16 %v301
    %v496 = vunpack.c.l.b16 %v302
    %v497 = vunpack.c.h.b16 %v302
    %v498 = vunpack.c.l.b16 %v303
    %v499 = vunpack.c.h.b16 %v303
    %v500 = vunpack.c.l.b16 %v304
    %v501 = vunpack.c.h.b16 %v304
    %v502 = vunpack.c.l.b16 %v305
    %v503 = vunpack.c.h.b16 %v305
    %v504 = vunpack.c.l.b16 %v306
    %v505 = vunpack.c.h.b16 %v306
    %v506 = vunpack.c.l.b16 %v307
    %v507 = vunpack.c.h.b16 %v307
    %v508 = vunpack.c.l.b16 %v308
    %v509 = vunpack.c.h.b16 %v308
    %v510 = vunpack.c.l.b16 %v309
    %v511 = vunpack.c.h.b16 %v309
    %v512 = vunpack.c.l.b16 %v310
    %v513 = vunpack.c.h.b16 %v310
    %v514 = vunpack.c.l.b16 %v311
    %v515 = vunpack.c.h.b16 %v311
    %v516 = vunpack.c.l.b16 %v312
    %v517 = vunpack.c.h.b16 %v312
    %v518 = vunpack.c.l.b16 %v313
    %v519 = vunpack.c.h.b16 %v313
    %v520 = vunpack.c.l.b16 %v314
    %v521 = vunpack.c.h.b16 %v314
    %v522 = vunpack.c.l.b16 %v315
    %v523 = vunpack.c.h.b16 %v315
    %v524 = vunpack.c.l.b16 %v316
    %v525 = vunpack.c.h.b16 %v316
    %v526 = vunpack.c.l.b16 %v317
    %v527 = vunpack.c.h.b16 %v317
    %v528 = vpack.c.b16 %v408, %v400
    %v529 = vpack.c.b16 %v409, %v401
    %v530 = vpack.c.b16 %v410, %v402
    %v531 = vpack.c.b16 %v411, %v403
    %v532 = vpack.c.b16 %v412, %v404
    %v533 = vpack.c.b16 %v413, %v405
    %v534 = vpack.c.b16 %v414, %v406
    %v535 = vpack.c.b16 %v415, %v407
    %v536 = vpack.c.b16 %v424, %v416
    %v537 = vpack.c.b16 %v425, %v417
    %v538 = vpack.c.b16 %v426, %v418
    %v539 = vpack.c.b16 %v427, %v419
    %v540 = vpack.c.b16 %v428, %v420
    %v541 = vpack.c.b16 %v429, %v421
    %v542 = vpack.c.b16 %v430, %v422
    %v543 = vpack.c.b16 %v431, %v423
    %v544 = vpack.c.b16 %v440, %v432
    %v545 = vpack.c.b16 %v441, %v433
    %v546 = vpack.c.b16 %v442, %v434
    %v547 = vpack.c.b16 %v443, %v435
    %v548 = vpack.c.b16 %v444, %v436
    %v549 = vpack.c.b16 %v445, %v437
    %v550 = vpack.c.b16 %v446, %v438
    %v551 = vpack.c.b16 %v447, %v439
    %v552 = vpack.c.b16 %v456, %v448
    %v553 = vpack.c.b16 %v457, %v449
    %v554 = vpack.c.b16 %v458, %v450
    %v555 = vpack.c.b16 %v459, %v451
    %v556 = vpack.c.b16 %v460, %v452
    %v557 = vpack.c.b16 %v461, %v453
    %v558 = vpack.c.b16 %v462, %v454
    %v559 = vpack.c.b16 %v463, %v455
    %v560 = vpack.c.b16 %v472, %v464
    %v561 = vpack.c.b16 %v473, %v465
    %v562 = vpack.c.b16 %v474, %v466
    %v563 = vpack.c.b16 %v475, %v467
    %v564 = vpack.c.b16 %v476, %v468
    %v565 = vpack.c.b16 %v477, %v469
    %v566 = vpack.c.b16 %v478, %v470
    %v567 = vpack.c.b16 %v479, %v471
    %v568 = vpack.c.b16 %v488, %v480
    %v569 = vpack.c.b16 %v489, %v481
    %v570 = vpack.c.b16 %v490, %v482
    %v571 = vpack.c.b16 %v491, %v483
    %v572 = vpack.c.b16 %v492, %v484
    %v573 = vpack.c.b16 %v493, %v485
    %v574 = vpack.c.b16 %v494, %v486
    %v575 = vpack.c.b16 %v495, %v487
    %v576 = vpack.c.b16 %v504, %v496
    %v577 = vpack.c.b16 %v505, %v497
    %v578 = vpack.c.b16 %v506, %v498
    %v579 = vpack.c.b16 %v507, %v499
    %v580 = vpack.c.b16 %v508, %v500
    %v581 = vpack.c.b16 %v509, %v501
    %v582 = vpack.c.b16 %v510, %v502
    %v583 = vpack.c.b16 %v511, %v503
    %v584 = vpack.c.b16 %v520, %v512
    %v585 = vpack.c.b16 %v521, %v513
    %v586 = vpack.c.b16 %v522, %v514
    %v587 = vpack.c.b16 %v523, %v515
    %v588 = vpack.c.b16 %v524, %v516
    %v589 = vpack.c.b16 %v525, %v517
    %v590 = vpack.c.b16 %v526, %v518
    %v591 = vpack.c.b16 %v527, %v519
    %656 = vmatpush.bf16.msra.mxu0 %v584
    %657 = vmatpush.bf16.msra.mxu0 %v576
    %658 = vmatpush.bf16.msra.mxu0 %v568
    %659 = vmatpush.bf16.msra.mxu0 %v560
    %660 = vmatpush.bf16.msra.mxu0 %v552
    %661 = vmatpush.bf16.msra.mxu0 %v544
    %662 = vmatpush.bf16.msra.mxu0 %v536
    %663 = vmatpush.bf16.msra.mxu0 %v528
    %664 = vmatmul.bf16.gmra.mxu0 %v253
    %v665 = vpop.f32.mrf.mxu0
    %v666 = vadd.f32 %v320, %v665
    %v667 = vpop.f32.mrf.mxu0
    %668 = vdwg.mxu0
    %669 = vmatpush.bf16.msra.mxu0 %v585
    %670 = vmatpush.bf16.msra.mxu0 %v577
    %671 = vmatpush.bf16.msra.mxu0 %v569
    %672 = vmatpush.bf16.msra.mxu0 %v561
    %673 = vmatpush.bf16.msra.mxu0 %v553
    %674 = vmatpush.bf16.msra.mxu0 %v545
    %675 = vmatpush.bf16.msra.mxu0 %v537
    %676 = vmatpush.bf16.msra.mxu0 %v529
    %677 = vmatmul.bf16.gmra.mxu0 %v253
    %v678 = vpop.f32.mrf.mxu0
    %v679 = vadd.f32 %v321, %v678
    %v680 = vpop.f32.mrf.mxu0
    %681 = vdwg.mxu0
    %682 = vmatpush.bf16.msra.mxu0 %v586
    %683 = vmatpush.bf16.msra.mxu0 %v578
    %684 = vmatpush.bf16.msra.mxu0 %v570
    %685 = vmatpush.bf16.msra.mxu0 %v562
    %686 = vmatpush.bf16.msra.mxu0 %v554
    %687 = vmatpush.bf16.msra.mxu0 %v546
    %688 = vmatpush.bf16.msra.mxu0 %v538
    %689 = vmatpush.bf16.msra.mxu0 %v530
    %690 = vmatmul.bf16.gmra.mxu0 %v253
    %v691 = vpop.f32.mrf.mxu0
    %v692 = vadd.f32 %v322, %v691
    %v693 = vpop.f32.mrf.mxu0
    %694 = vdwg.mxu0
    %695 = vmatpush.bf16.msra.mxu0 %v587
    %696 = vmatpush.bf16.msra.mxu0 %v579
    %697 = vmatpush.bf16.msra.mxu0 %v571
    %698 = vmatpush.bf16.msra.mxu0 %v563
    %699 = vmatpush.bf16.msra.mxu0 %v555
    %700 = vmatpush.bf16.msra.mxu0 %v547
    %701 = vmatpush.bf16.msra.mxu0 %v539
    %702 = vmatpush.bf16.msra.mxu0 %v531
    %703 = vmatmul.bf16.gmra.mxu0 %v253
    %v704 = vpop.f32.mrf.mxu0
    %v705 = vadd.f32 %v323, %v704
    %v706 = vpop.f32.mrf.mxu0
    %707 = vdwg.mxu0
    %708 = vmatpush.bf16.msra.mxu0 %v588
    %709 = vmatpush.bf16.msra.mxu0 %v580
    %710 = vmatpush.bf16.msra.mxu0 %v572
    %711 = vmatpush.bf16.msra.mxu0 %v564
    %712 = vmatpush.bf16.msra.mxu0 %v556
    %713 = vmatpush.bf16.msra.mxu0 %v548
    %714 = vmatpush.bf16.msra.mxu0 %v540
    %715 = vmatpush.bf16.msra.mxu0 %v532
    %716 = vmatmul.bf16.gmra.mxu0 %v253
    %v717 = vpop.f32.mrf.mxu0
    %v718 = vadd.f32 %v324, %v717
    %v719 = vpop.f32.mrf.mxu0
    %720 = vdwg.mxu0
    %721 = vmatpush.bf16.msra.mxu0 %v589
    %722 = vmatpush.bf16.msra.mxu0 %v581
    %723 = vmatpush.bf16.msra.mxu0 %v573
    %724 = vmatpush.bf16.msra.mxu0 %v565
    %725 = vmatpush.bf16.msra.mxu0 %v557
    %726 = vmatpush.bf16.msra.mxu0 %v549
    %727 = vmatpush.bf16.msra.mxu0 %v541
    %728 = vmatpush.bf16.msra.mxu0 %v533
    %729 = vmatmul.bf16.gmra.mxu0 %v253
    %v730 = vpop.f32.mrf.mxu0
    %v731 = vadd.f32 %v325, %v730
    %v732 = vpop.f32.mrf.mxu0
    %733 = vdwg.mxu0
    %734 = vmatpush.bf16.msra.mxu0 %v590
    %735 = vmatpush.bf16.msra.mxu0 %v582
    %736 = vmatpush.bf16.msra.mxu0 %v574
    %737 = vmatpush.bf16.msra.mxu0 %v566
    %738 = vmatpush.bf16.msra.mxu0 %v558
    %739 = vmatpush.bf16.msra.mxu0 %v550
    %740 = vmatpush.bf16.msra.mxu0 %v542
    %741 = vmatpush.bf16.msra.mxu0 %v534
    %742 = vmatmul.bf16.gmra.mxu0 %v253
    %v743 = vpop.f32.mrf.mxu0
    %v744 = vadd.f32 %v326, %v743
    %v745 = vpop.f32.mrf.mxu0
    %746 = vdwg.mxu0
    %747 = vmatpush.bf16.msra.mxu0 %v591
    %748 = vmatpush.bf16.msra.mxu0 %v583
    %749 = vmatpush.bf16.msra.mxu0 %v575
    %750 = vmatpush.bf16.msra.mxu0 %v567
    %751 = vmatpush.bf16.msra.mxu0 %v559
    %752 = vmatpush.bf16.msra.mxu0 %v551
    %753 = vmatpush.bf16.msra.mxu0 %v543
    %754 = vmatpush.bf16.msra.mxu0 %v535
    %755 = vmatmul.bf16.gmra.mxu0 %v253
    %v756 = vpop.f32.mrf.mxu0
    %v757 = vadd.f32 %v327, %v756
    %v758 = vpop.f32.mrf.mxu0
    %759 = vdwg.mxu0
    %v760 = vsub.f32 0.0, %v666
    %v761 = vsub.f32 0.0, %v679
    %v762 = vsub.f32 0.0, %v692
    %v763 = vsub.f32 0.0, %v705
    %v764 = vsub.f32 0.0, %v718
    %v765 = vsub.f32 0.0, %v731
    %v766 = vsub.f32 0.0, %v744
    %v767 = vsub.f32 0.0, %v757
    %v768 = vmul.f32 %v760, 1.442695
    %v769 = vpow.pop %v768
    %v770 = vmul.f32 %v761, 1.442695
    %v771 = vpow.pop %v770
    %v772 = vmul.f32 %v762, 1.442695
    %v773 = vpow.pop %v772
    %v774 = vmul.f32 %v763, 1.442695
    %v775 = vpow.pop %v774
    %v776 = vmul.f32 %v764, 1.442695
    %v777 = vpow.pop %v776
    %v778 = vmul.f32 %v765, 1.442695
    %v779 = vpow.pop %v778
    %v780 = vmul.f32 %v766, 1.442695
    %v781 = vpow.pop %v780
    %v782 = vmul.f32 %v767, 1.442695
    %v783 = vpow.pop %v782
    %v784 = vadd.f32 %v769, 1.0
    %v785 = vadd.f32 %v771, 1.0
    %v786 = vadd.f32 %v773, 1.0
    %v787 = vadd.f32 %v775, 1.0
    %v788 = vadd.f32 %v777, 1.0
    %v789 = vadd.f32 %v779, 1.0
    %v790 = vadd.f32 %v781, 1.0
    %v791 = vadd.f32 %v783, 1.0
    %v792 = vrcp.pop %v784
    %v793 = vrcp.pop %v785
    %v794 = vrcp.pop %v786
    %v795 = vrcp.pop %v787
    %v796 = vrcp.pop %v788
    %v797 = vrcp.pop %v789
    %v798 = vrcp.pop %v790
    %v799 = vrcp.pop %v791
    %v800 = vmul.f32 %v666, %v792
    %v801 = vmul.f32 %v679, %v793
    %v802 = vmul.f32 %v692, %v794
    %v803 = vmul.f32 %v705, %v795
    %v804 = vmul.f32 %v718, %v796
    %v805 = vmul.f32 %v731, %v797
    %v806 = vmul.f32 %v744, %v798
    %v807 = vmul.f32 %v757, %v799
    %v816 = vrot.slane %v801, 6
    %v817 = vrot.slane %v802, 4
    %v818 = vrot.slane %v803, 2
    %v819 = vrot.slane %v805, 6
    %v820 = vrot.slane %v806, 4
    %v821 = vrot.slane %v807, 2
    %vm822 = vcmask 1041408
    %v823 = vsel %vm822, %v800, %v816
    %vm824 = vcmask 1045508
    %v825 = vsel %vm824, %v817, %v818
    %vm826 = vcmask 1043456
    %v827 = vsel %vm826, %v823, %v825
    %v828 = vsel %vm822, %v804, %v819
    %v829 = vsel %vm824, %v820, %v821
    %v830 = vsel %vm826, %v828, %v829
    %833 = vst [vmem:[#allocation10] sm:$0xff] %v827
    %834 = vst [vmem:[#allocation10 + $0x8] sm:$0xff] %v830
    // Predicated region
    $region38: #{tpu_custom_call.1} parent=1 // pred_check
      _
    $region39: #{tpu_custom_call.1} parent=1 // pred_check_branch
      %836 = sbr.rel (0) target = $region41
    $region40: #{tpu_custom_call.1} parent=1 // pred_region
      %838 = vsyncadd [#allocation4], 0
      %s840 = sshll.u32 [#allocation10], 4
      %s841 = int_to_ptr.vmem [resolvable:$true] %s840
      %s842 = sshll.u32 %s5, 4
      %s843 = int_to_ptr.hbm [resolvable:$true] %s842
      %845 = dma.vmem_to_hbm [thread:$0]  %s841, 256, %s843, [#allocation4]
    $region41: #{tpu_custom_call.1} parent=1 // pred_fallthru
      _
    // Predicated region
    $region42: #{tpu_custom_call.1} parent=1 // pred_check
      _
    $region43: #{tpu_custom_call.1} parent=1 // pred_check_branch
      %847 = sbr.rel (0) target = $region45
    $region44: #{tpu_custom_call.1} parent=1 // pred_region
      %849 = dma.done [#allocation4], 256
    $region45: #{tpu_custom_call.1} parent=1 // pred_fallthru
      _
    %850 = vsyncpa [#allocation3], 1
    %851 = vsyncpa [#allocation6], 1
    %852 = vsyncpa [#allocation9], 1
    %853 = vsyncpa [#allocation4], 1

</llo_original>
